<compile_context>
chip_gen: v7x
topology: tpu7x:2x2x1
jax: 0.10.0
libtpu: 0.0.40
codegen_flags: <defaults>
</compile_context>

<pallas_src>
import jax
import jax.numpy as jnp
from jax import lax
from jax.experimental import pallas as pl
from jax.experimental.pallas import tpu as pltpu

EPS = 1e-8  # F.cosine_similarity default eps


def _round_up(v, m):
    return -(-v // m) * m


def cos_kernel(wt_ref, b_ref, x_ref, o_ref):
    # wt_ref: (h, Cp)    wt[s, c] = W[c, s]  (zero-padded past the real C)
    # b_ref : (1, Cp)    conv bias           (zero-padded past the real C)
    # x_ref : (TN, sn*D) flattened per-sample shot features (lane-dense rows)
    # o_ref : (TN, Cp)   cosine similarity per channel
    h = wt_ref.shape[0]
    sn = 2 * h
    cp = wt_ref.shape[1]
    tn = x_ref.shape[0]
    d = x_ref.shape[1] // sn

    wt = wt_ref[...].astype(jnp.float32)          # (h, Cp)
    b = b_ref[...].astype(jnp.float32)            # (1, Cp)
    db2 = (float(d) * b) * b                      # (1, Cp)  == D * bias^2

    # Per-shot feature slices, loaded straight from the VMEM block.
    xs = [x_ref[:, s * d:(s + 1) * d].astype(jnp.float32) for s in range(sn)]

    num = jnp.zeros((tn, cp), jnp.float32)
    n1 = jnp.zeros((tn, cp), jnp.float32)
    n2 = jnp.zeros((tn, cp), jnp.float32)

    # Quadratic (Gram) terms: <x_s, x_t> lane-reductions (XLU) broadcast
    # against W[s]*W[t] channel coefficients (VPU FMAs on (TN, Cp) tiles).
    for s in range(h):
        ws = wt[s:s + 1, :]                                       # (1, Cp)
        for t in range(h):
            wst = ws * wt[t:t + 1, :]                             # (1, Cp)
            g11 = jnp.sum(xs[s] * xs[t], axis=1, keepdims=True)       # (TN,1)
            g12 = jnp.sum(xs[s] * xs[h + t], axis=1, keepdims=True)
            g22 = jnp.sum(xs[h + s] * xs[h + t], axis=1, keepdims=True)
            n1 = n1 + g11 * wst
            num = num + g12 * wst
            n2 = n2 + g22 * wst

    # Linear (bias * W * row-sum) terms.
    for s in range(h):
        bws = b * wt[s:s + 1, :]                                  # (1, Cp)
        r1 = jnp.sum(xs[s], axis=1, keepdims=True)                # (TN,1)
        r2 = jnp.sum(xs[h + s], axis=1, keepdims=True)
        n1 = n1 + 2.0 * (r1 * bws)
        n2 = n2 + 2.0 * (r2 * bws)
        num = num + (r1 + r2) * bws

    num = num + db2
    n1 = n1 + db2
    n2 = n2 + db2

    # 1/max(||p||, eps) == rsqrt(max(||p||^2, eps^2))  (EUP, no divides)
    inv1 = lax.rsqrt(jnp.maximum(n1, EPS * EPS))
    inv2 = lax.rsqrt(jnp.maximum(n2, EPS * EPS))
    o_ref[...] = (num * inv1 * inv2).astype(o_ref.dtype)


def cos_forward(x, weight, bias, shot_num, max_block_n=1024,
                vmem_budget_bytes=None, vmem_limit_bytes=None):
    """x: (B, S, shot_num, D); weight: (C, 1, h, 1); bias: (C,) -> (B*S, C)."""
    B, S, sn, D = x.shape
    assert sn == shot_num
    h = shot_num // 2
    C = weight.shape[0]
    N = B * S

    # Pad channels to a lane multiple: unmasked lane-dense output stores.
    # Padded channels have zero weight/bias -> exact 0 output, sliced off below.
    Cp = _round_up(max(C, 128), 128)

    # One flat lane-dense row per sample (pure metadata reshape, no HBM copy;
    # replaces the previous full-array concatenate padding pass).
    xr = x.reshape(N, sn * D)

    w2 = weight.reshape(C, h).astype(jnp.float32)                    # W[c, s]
    wt = jnp.zeros((h, Cp), jnp.float32).at[:, :C].set(w2.T)         # wt[s, c]
    b2 = jnp.zeros((1, Cp), jnp.float32).at[:, :C].set(
        bias.reshape(1, C).astype(jnp.float32))

    # Per-generation VMEM budgeting (v7x: 64 MiB/TC; v5e/v6e: 128 MiB).
    cap = 64 << 20
    try:
        info = pltpu.get_tpu_info()
        cap = int(getattr(info, "vmem_capacity_bytes", cap)) or cap
    except Exception:
        pass
    if vmem_budget_bytes is None:
        vmem_budget_bytes = min(48 << 20, cap // 2)
    if vmem_limit_bytes is None:
        vmem_limit_bytes = max(32 << 20,
                               min(cap - (16 << 20),
                                   vmem_budget_bytes + (16 << 20)))

    # Samples per block: double-buffered input rows + f32 working slices +
    # accumulators/output buffers; multiple of 8; capped so large N still
    # yields >= 4 grid blocks (keeps both v7x TensorCores busy).
    per_sample = (2 * sn * D * x.dtype.itemsize      # input block, 2 buffers
                  + 4 * 2 * sn * D                   # f32 shot slices / temps
                  + 4 * 5 * Cp)                      # 3 accumulators + 2 out buffers
    tn = int(min(max_block_n, max(8, vmem_budget_bytes // per_sample)))
    tn = min(tn, max(8, _round_up(pl.cdiv(N, 4), 8)))
    tn = min(tn, _round_up(N, 8))
    tn = max(8, (tn // 8) * 8)
    grid = (pl.cdiv(N, tn),)

    # TODO(synk): on v7x, sweep pltpu.CORE_PARALLEL on the sample axis and
    # pipeline_mode=pl.Buffered(3) on the x spec once DMA latency is exposed.
    out = pl.pallas_call(
        cos_kernel,
        out_shape=jax.ShapeDtypeStruct((N, Cp), jnp.float32),
        grid_spec=pltpu.PrefetchScalarGridSpec(
            num_scalar_prefetch=0,
            grid=grid,
            in_specs=[
                pl.BlockSpec((h, Cp), lambda i: (0, 0)),        # weights (resident)
                pl.BlockSpec((1, Cp), lambda i: (0, 0)),        # bias    (resident)
                pl.BlockSpec((tn, sn * D), lambda i: (i, 0)),   # sample rows
            ],
            out_specs=pl.BlockSpec((tn, Cp), lambda i: (i, 0)),
        ),
        compiler_params=pltpu.CompilerParams(
            dimension_semantics=("parallel",),
            vmem_limit_bytes=int(vmem_limit_bytes)),
    )(wt, b2, xr)

    return out[:N, :C]


def cos_reference(x, weight, bias, shot_num):
    """Pure-JAX reference replicating the PyTorch forward exactly."""
    B, S, sn, D = x.shape
    h = shot_num // 2
    C = weight.shape[0]
    xr = x.reshape(B * S, sn, D)
    w = weight.reshape(C, h)
    hp = lax.Precision.HIGHEST
    p1 = jnp.einsum('ck,nkd->ncd', w, xr[:, :h, :], precision=hp) \
        + bias[None, :, None]
    p2 = jnp.einsum('ck,nkd->ncd', w, xr[:, h:, :], precision=hp) \
        + bias[None, :, None]
    num = jnp.sum(p1 * p2, axis=2)
    n1 = jnp.maximum(jnp.linalg.norm(p1, axis=2), EPS)
    n2 = jnp.maximum(jnp.linalg.norm(p2, axis=2), EPS)
    return num / (n1 * n2)


if __name__ == "__main__":
    # Small, shot-boundary-style shapes: batch=2, seq=4, shot_num=8, feat=32,
    # sim_channel=16.
    B, S, shot_num, D, C = 2, 4, 8, 32, 16
    h = shot_num // 2

    key = jax.random.PRNGKey(0)
    kx, kw, kb = jax.random.split(key, 3)
    x = jax.random.normal(kx, (B, S, shot_num, D), dtype=jnp.float32)
    # Deterministic synthetic Conv2d(1, C, (h, 1)) parameters.
    weight = jax.random.normal(kw, (C, 1, h, 1), dtype=jnp.float32) * 0.1
    bias = jax.random.normal(kb, (C,), dtype=jnp.float32) * 0.1

    out = cos_forward(x, weight, bias, shot_num)
    out = jax.block_until_ready(out)

    ref = cos_reference(x, weight, bias, shot_num)
    assert out.shape == (B * S, C), out.shape
    assert jnp.allclose(out, ref, atol=1e-4, rtol=1e-3), (
        float(jnp.max(jnp.abs(out - ref))))

    print("KERNEL_OK")
</pallas_src>

<mosaic_0001>
module attributes {stable_mosaic.version = 11 : i64} {
  func.func @cos_kernel(%arg0: i32, %arg1: memref<4x128xf32, #tpu.memory_space<vmem>>, %arg2: memref<1x128xf32, #tpu.memory_space<vmem>>, %arg3: memref<8x256xf32, #tpu.memory_space<vmem>>, %arg4: memref<8x128xf32, #tpu.memory_space<vmem>>) attributes {dimension_semantics = [#tpu.dimension_semantics<parallel>], iteration_bounds = array<i64: 1>, scalar_prefetch = 0 : i64, scratch_operands = 0 : i64, tpu.core_type = #tpu.core_type<tc>, window_params = [{pipeline_mode = #tpu.pipeline_mode<synchronous>, transform_indices = @transform_0, window_bounds = array<i64: 4, 128>}, {pipeline_mode = #tpu.pipeline_mode<synchronous>, transform_indices = @transform_1, window_bounds = array<i64: 1, 128>}, {transform_indices = @transform_2, window_bounds = array<i64: 8, 256>}, {transform_indices = @transform_3, window_bounds = array<i64: 8, 128>}]} {
    %c0 = arith.constant 0 : index
    %c0_0 = arith.constant 0 : index
    %0 = vector.load %arg1[%c0, %c0_0] : memref<4x128xf32, #tpu.memory_space<vmem>>, vector<4x128xf32>
    %c0_1 = arith.constant 0 : index
    %c0_2 = arith.constant 0 : index
    %1 = vector.load %arg2[%c0_1, %c0_2] : memref<1x128xf32, #tpu.memory_space<vmem>>, vector<1x128xf32>
    %cst = arith.constant 3.200000e+01 : f32
    %2 = vector.broadcast %cst : f32 to vector<1x128xf32>
    %3 = arith.mulf %2, %1 : vector<1x128xf32>
    %4 = arith.mulf %3, %1 : vector<1x128xf32>
    %c0_3 = arith.constant 0 : index
    %c0_4 = arith.constant 0 : index
    %5 = vector.load %arg3[%c0_3, %c0_4] : memref<8x256xf32, #tpu.memory_space<vmem>>, vector<8x32xf32>
    %c0_5 = arith.constant 0 : index
    %c32 = arith.constant 32 : index
    %6 = vector.load %arg3[%c0_5, %c32] : memref<8x256xf32, #tpu.memory_space<vmem>>, vector<8x32xf32>
    %c0_6 = arith.constant 0 : index
    %c64 = arith.constant 64 : index
    %7 = vector.load %arg3[%c0_6, %c64] : memref<8x256xf32, #tpu.memory_space<vmem>>, vector<8x32xf32>
    %c0_7 = arith.constant 0 : index
    %c96 = arith.constant 96 : index
    %8 = vector.load %arg3[%c0_7, %c96] : memref<8x256xf32, #tpu.memory_space<vmem>>, vector<8x32xf32>
    %c0_8 = arith.constant 0 : index
    %c128 = arith.constant 128 : index
    %9 = vector.load %arg3[%c0_8, %c128] : memref<8x256xf32, #tpu.memory_space<vmem>>, vector<8x32xf32>
    %c0_9 = arith.constant 0 : index
    %c160 = arith.constant 160 : index
    %10 = vector.load %arg3[%c0_9, %c160] : memref<8x256xf32, #tpu.memory_space<vmem>>, vector<8x32xf32>
    %c0_10 = arith.constant 0 : index
    %c192 = arith.constant 192 : index
    %11 = vector.load %arg3[%c0_10, %c192] : memref<8x256xf32, #tpu.memory_space<vmem>>, vector<8x32xf32>
    %c0_11 = arith.constant 0 : index
    %c224 = arith.constant 224 : index
    %12 = vector.load %arg3[%c0_11, %c224] : memref<8x256xf32, #tpu.memory_space<vmem>>, vector<8x32xf32>
    %cst_12 = arith.constant 0.000000e+00 : f32
    %13 = vector.broadcast %cst_12 : f32 to vector<8x128xf32>
    %cst_13 = arith.constant 0.000000e+00 : f32
    %14 = vector.broadcast %cst_13 : f32 to vector<8x128xf32>
    %cst_14 = arith.constant 0.000000e+00 : f32
    %15 = vector.broadcast %cst_14 : f32 to vector<8x128xf32>
    %16 = vector.extract_strided_slice %0 {offsets = [0, 0], sizes = [1, 128], strides = [1, 1]} : vector<4x128xf32> to vector<1x128xf32>
    %17 = vector.extract_strided_slice %0 {offsets = [0, 0], sizes = [1, 128], strides = [1, 1]} : vector<4x128xf32> to vector<1x128xf32>
    %18 = arith.mulf %16, %17 : vector<1x128xf32>
    %19 = arith.mulf %5, %5 : vector<8x32xf32>
    %cst_15 = arith.constant dense<0.000000e+00> : vector<8xf32>
    %20 = vector.multi_reduction <add>, %19, %cst_15 [1] : vector<8x32xf32> to vector<8xf32>
    %21 = vector.shape_cast %20 : vector<8xf32> to vector<8x1xf32>
    %22 = arith.mulf %5, %9 : vector<8x32xf32>
    %cst_16 = arith.constant dense<0.000000e+00> : vector<8xf32>
    %23 = vector.multi_reduction <add>, %22, %cst_16 [1] : vector<8x32xf32> to vector<8xf32>
    %24 = vector.shape_cast %23 : vector<8xf32> to vector<8x1xf32>
    %25 = arith.mulf %9, %9 : vector<8x32xf32>
    %cst_17 = arith.constant dense<0.000000e+00> : vector<8xf32>
    %26 = vector.multi_reduction <add>, %25, %cst_17 [1] : vector<8x32xf32> to vector<8xf32>
    %27 = vector.shape_cast %26 : vector<8xf32> to vector<8x1xf32>
    %28 = vector.broadcast %21 : vector<8x1xf32> to vector<8x128xf32>
    %29 = vector.broadcast %18 : vector<1x128xf32> to vector<8x128xf32>
    %30 = arith.mulf %28, %29 : vector<8x128xf32>
    %31 = arith.addf %14, %30 : vector<8x128xf32>
    %32 = vector.broadcast %24 : vector<8x1xf32> to vector<8x128xf32>
    %33 = vector.broadcast %18 : vector<1x128xf32> to vector<8x128xf32>
    %34 = arith.mulf %32, %33 : vector<8x128xf32>
    %35 = arith.addf %13, %34 : vector<8x128xf32>
    %36 = vector.broadcast %27 : vector<8x1xf32> to vector<8x128xf32>
    %37 = vector.broadcast %18 : vector<1x128xf32> to vector<8x128xf32>
    %38 = arith.mulf %36, %37 : vector<8x128xf32>
    %39 = arith.addf %15, %38 : vector<8x128xf32>
    %40 = vector.extract_strided_slice %0 {offsets = [1, 0], sizes = [1, 128], strides = [1, 1]} : vector<4x128xf32> to vector<1x128xf32>
    %41 = arith.mulf %16, %40 : vector<1x128xf32>
    %42 = arith.mulf %5, %6 : vector<8x32xf32>
    %cst_18 = arith.constant dense<0.000000e+00> : vector<8xf32>
    %43 = vector.multi_reduction <add>, %42, %cst_18 [1] : vector<8x32xf32> to vector<8xf32>
    %44 = vector.shape_cast %43 : vector<8xf32> to vector<8x1xf32>
    %45 = arith.mulf %5, %10 : vector<8x32xf32>
    %cst_19 = arith.constant dense<0.000000e+00> : vector<8xf32>
    %46 = vector.multi_reduction <add>, %45, %cst_19 [1] : vector<8x32xf32> to vector<8xf32>
    %47 = vector.shape_cast %46 : vector<8xf32> to vector<8x1xf32>
    %48 = arith.mulf %9, %10 : vector<8x32xf32>
    %cst_20 = arith.constant dense<0.000000e+00> : vector<8xf32>
    %49 = vector.multi_reduction <add>, %48, %cst_20 [1] : vector<8x32xf32> to vector<8xf32>
    %50 = vector.shape_cast %49 : vector<8xf32> to vector<8x1xf32>
    %51 = vector.broadcast %44 : vector<8x1xf32> to vector<8x128xf32>
    %52 = vector.broadcast %41 : vector<1x128xf32> to vector<8x128xf32>
    %53 = arith.mulf %51, %52 : vector<8x128xf32>
    %54 = arith.addf %31, %53 : vector<8x128xf32>
    %55 = vector.broadcast %47 : vector<8x1xf32> to vector<8x128xf32>
    %56 = vector.broadcast %41 : vector<1x128xf32> to vector<8x128xf32>
    %57 = arith.mulf %55, %56 : vector<8x128xf32>
    %58 = arith.addf %35, %57 : vector<8x128xf32>
    %59 = vector.broadcast %50 : vector<8x1xf32> to vector<8x128xf32>
    %60 = vector.broadcast %41 : vector<1x128xf32> to vector<8x128xf32>
    %61 = arith.mulf %59, %60 : vector<8x128xf32>
    %62 = arith.addf %39, %61 : vector<8x128xf32>
    %63 = vector.extract_strided_slice %0 {offsets = [2, 0], sizes = [1, 128], strides = [1, 1]} : vector<4x128xf32> to vector<1x128xf32>
    %64 = arith.mulf %16, %63 : vector<1x128xf32>
    %65 = arith.mulf %5, %7 : vector<8x32xf32>
    %cst_21 = arith.constant dense<0.000000e+00> : vector<8xf32>
    %66 = vector.multi_reduction <add>, %65, %cst_21 [1] : vector<8x32xf32> to vector<8xf32>
    %67 = vector.shape_cast %66 : vector<8xf32> to vector<8x1xf32>
    %68 = arith.mulf %5, %11 : vector<8x32xf32>
    %cst_22 = arith.constant dense<0.000000e+00> : vector<8xf32>
    %69 = vector.multi_reduction <add>, %68, %cst_22 [1] : vector<8x32xf32> to vector<8xf32>
    %70 = vector.shape_cast %69 : vector<8xf32> to vector<8x1xf32>
    %71 = arith.mulf %9, %11 : vector<8x32xf32>
    %cst_23 = arith.constant dense<0.000000e+00> : vector<8xf32>
    %72 = vector.multi_reduction <add>, %71, %cst_23 [1] : vector<8x32xf32> to vector<8xf32>
    %73 = vector.shape_cast %72 : vector<8xf32> to vector<8x1xf32>
    %74 = vector.broadcast %67 : vector<8x1xf32> to vector<8x128xf32>
    %75 = vector.broadcast %64 : vector<1x128xf32> to vector<8x128xf32>
    %76 = arith.mulf %74, %75 : vector<8x128xf32>
    %77 = arith.addf %54, %76 : vector<8x128xf32>
    %78 = vector.broadcast %70 : vector<8x1xf32> to vector<8x128xf32>
    %79 = vector.broadcast %64 : vector<1x128xf32> to vector<8x128xf32>
    %80 = arith.mulf %78, %79 : vector<8x128xf32>
    %81 = arith.addf %58, %80 : vector<8x128xf32>
    %82 = vector.broadcast %73 : vector<8x1xf32> to vector<8x128xf32>
    %83 = vector.broadcast %64 : vector<1x128xf32> to vector<8x128xf32>
    %84 = arith.mulf %82, %83 : vector<8x128xf32>
    %85 = arith.addf %62, %84 : vector<8x128xf32>
    %86 = vector.extract_strided_slice %0 {offsets = [3, 0], sizes = [1, 128], strides = [1, 1]} : vector<4x128xf32> to vector<1x128xf32>
    %87 = arith.mulf %16, %86 : vector<1x128xf32>
    %88 = arith.mulf %5, %8 : vector<8x32xf32>
    %cst_24 = arith.constant dense<0.000000e+00> : vector<8xf32>
    %89 = vector.multi_reduction <add>, %88, %cst_24 [1] : vector<8x32xf32> to vector<8xf32>
    %90 = vector.shape_cast %89 : vector<8xf32> to vector<8x1xf32>
    %91 = arith.mulf %5, %12 : vector<8x32xf32>
    %cst_25 = arith.constant dense<0.000000e+00> : vector<8xf32>
    %92 = vector.multi_reduction <add>, %91, %cst_25 [1] : vector<8x32xf32> to vector<8xf32>
    %93 = vector.shape_cast %92 : vector<8xf32> to vector<8x1xf32>
    %94 = arith.mulf %9, %12 : vector<8x32xf32>
    %cst_26 = arith.constant dense<0.000000e+00> : vector<8xf32>
    %95 = vector.multi_reduction <add>, %94, %cst_26 [1] : vector<8x32xf32> to vector<8xf32>
    %96 = vector.shape_cast %95 : vector<8xf32> to vector<8x1xf32>
    %97 = vector.broadcast %90 : vector<8x1xf32> to vector<8x128xf32>
    %98 = vector.broadcast %87 : vector<1x128xf32> to vector<8x128xf32>
    %99 = arith.mulf %97, %98 : vector<8x128xf32>
    %100 = arith.addf %77, %99 : vector<8x128xf32>
    %101 = vector.broadcast %93 : vector<8x1xf32> to vector<8x128xf32>
    %102 = vector.broadcast %87 : vector<1x128xf32> to vector<8x128xf32>
    %103 = arith.mulf %101, %102 : vector<8x128xf32>
    %104 = arith.addf %81, %103 : vector<8x128xf32>
    %105 = vector.broadcast %96 : vector<8x1xf32> to vector<8x128xf32>
    %106 = vector.broadcast %87 : vector<1x128xf32> to vector<8x128xf32>
    %107 = arith.mulf %105, %106 : vector<8x128xf32>
    %108 = arith.addf %85, %107 : vector<8x128xf32>
    %109 = vector.extract_strided_slice %0 {offsets = [1, 0], sizes = [1, 128], strides = [1, 1]} : vector<4x128xf32> to vector<1x128xf32>
    %110 = vector.extract_strided_slice %0 {offsets = [0, 0], sizes = [1, 128], strides = [1, 1]} : vector<4x128xf32> to vector<1x128xf32>
    %111 = arith.mulf %109, %110 : vector<1x128xf32>
    %112 = arith.mulf %6, %5 : vector<8x32xf32>
    %cst_27 = arith.constant dense<0.000000e+00> : vector<8xf32>
    %113 = vector.multi_reduction <add>, %112, %cst_27 [1] : vector<8x32xf32> to vector<8xf32>
    %114 = vector.shape_cast %113 : vector<8xf32> to vector<8x1xf32>
    %115 = arith.mulf %6, %9 : vector<8x32xf32>
    %cst_28 = arith.constant dense<0.000000e+00> : vector<8xf32>
    %116 = vector.multi_reduction <add>, %115, %cst_28 [1] : vector<8x32xf32> to vector<8xf32>
    %117 = vector.shape_cast %116 : vector<8xf32> to vector<8x1xf32>
    %118 = arith.mulf %10, %9 : vector<8x32xf32>
    %cst_29 = arith.constant dense<0.000000e+00> : vector<8xf32>
    %119 = vector.multi_reduction <add>, %118, %cst_29 [1] : vector<8x32xf32> to vector<8xf32>
    %120 = vector.shape_cast %119 : vector<8xf32> to vector<8x1xf32>
    %121 = vector.broadcast %114 : vector<8x1xf32> to vector<8x128xf32>
    %122 = vector.broadcast %111 : vector<1x128xf32> to vector<8x128xf32>
    %123 = arith.mulf %121, %122 : vector<8x128xf32>
    %124 = arith.addf %100, %123 : vector<8x128xf32>
    %125 = vector.broadcast %117 : vector<8x1xf32> to vector<8x128xf32>
    %126 = vector.broadcast %111 : vector<1x128xf32> to vector<8x128xf32>
    %127 = arith.mulf %125, %126 : vector<8x128xf32>
    %128 = arith.addf %104, %127 : vector<8x128xf32>
    %129 = vector.broadcast %120 : vector<8x1xf32> to vector<8x128xf32>
    %130 = vector.broadcast %111 : vector<1x128xf32> to vector<8x128xf32>
    %131 = arith.mulf %129, %130 : vector<8x128xf32>
    %132 = arith.addf %108, %131 : vector<8x128xf32>
    %133 = vector.extract_strided_slice %0 {offsets = [1, 0], sizes = [1, 128], strides = [1, 1]} : vector<4x128xf32> to vector<1x128xf32>
    %134 = arith.mulf %109, %133 : vector<1x128xf32>
    %135 = arith.mulf %6, %6 : vector<8x32xf32>
    %cst_30 = arith.constant dense<0.000000e+00> : vector<8xf32>
    %136 = vector.multi_reduction <add>, %135, %cst_30 [1] : vector<8x32xf32> to vector<8xf32>
    %137 = vector.shape_cast %136 : vector<8xf32> to vector<8x1xf32>
    %138 = arith.mulf %6, %10 : vector<8x32xf32>
    %cst_31 = arith.constant dense<0.000000e+00> : vector<8xf32>
    %139 = vector.multi_reduction <add>, %138, %cst_31 [1] : vector<8x32xf32> to vector<8xf32>
    %140 = vector.shape_cast %139 : vector<8xf32> to vector<8x1xf32>
    %141 = arith.mulf %10, %10 : vector<8x32xf32>
    %cst_32 = arith.constant dense<0.000000e+00> : vector<8xf32>
    %142 = vector.multi_reduction <add>, %141, %cst_32 [1] : vector<8x32xf32> to vector<8xf32>
    %143 = vector.shape_cast %142 : vector<8xf32> to vector<8x1xf32>
    %144 = vector.broadcast %137 : vector<8x1xf32> to vector<8x128xf32>
    %145 = vector.broadcast %134 : vector<1x128xf32> to vector<8x128xf32>
    %146 = arith.mulf %144, %145 : vector<8x128xf32>
    %147 = arith.addf %124, %146 : vector<8x128xf32>
    %148 = vector.broadcast %140 : vector<8x1xf32> to vector<8x128xf32>
    %149 = vector.broadcast %134 : vector<1x128xf32> to vector<8x128xf32>
    %150 = arith.mulf %148, %149 : vector<8x128xf32>
    %151 = arith.addf %128, %150 : vector<8x128xf32>
    %152 = vector.broadcast %143 : vector<8x1xf32> to vector<8x128xf32>
    %153 = vector.broadcast %134 : vector<1x128xf32> to vector<8x128xf32>
    %154 = arith.mulf %152, %153 : vector<8x128xf32>
    %155 = arith.addf %132, %154 : vector<8x128xf32>
    %156 = vector.extract_strided_slice %0 {offsets = [2, 0], sizes = [1, 128], strides = [1, 1]} : vector<4x128xf32> to vector<1x128xf32>
    %157 = arith.mulf %109, %156 : vector<1x128xf32>
    %158 = arith.mulf %6, %7 : vector<8x32xf32>
    %cst_33 = arith.constant dense<0.000000e+00> : vector<8xf32>
    %159 = vector.multi_reduction <add>, %158, %cst_33 [1] : vector<8x32xf32> to vector<8xf32>
    %160 = vector.shape_cast %159 : vector<8xf32> to vector<8x1xf32>
    %161 = arith.mulf %6, %11 : vector<8x32xf32>
    %cst_34 = arith.constant dense<0.000000e+00> : vector<8xf32>
    %162 = vector.multi_reduction <add>, %161, %cst_34 [1] : vector<8x32xf32> to vector<8xf32>
    %163 = vector.shape_cast %162 : vector<8xf32> to vector<8x1xf32>
    %164 = arith.mulf %10, %11 : vector<8x32xf32>
    %cst_35 = arith.constant dense<0.000000e+00> : vector<8xf32>
    %165 = vector.multi_reduction <add>, %164, %cst_35 [1] : vector<8x32xf32> to vector<8xf32>
    %166 = vector.shape_cast %165 : vector<8xf32> to vector<8x1xf32>
    %167 = vector.broadcast %160 : vector<8x1xf32> to vector<8x128xf32>
    %168 = vector.broadcast %157 : vector<1x128xf32> to vector<8x128xf32>
    %169 = arith.mulf %167, %168 : vector<8x128xf32>
    %170 = arith.addf %147, %169 : vector<8x128xf32>
    %171 = vector.broadcast %163 : vector<8x1xf32> to vector<8x128xf32>
    %172 = vector.broadcast %157 : vector<1x128xf32> to vector<8x128xf32>
    %173 = arith.mulf %171, %172 : vector<8x128xf32>
    %174 = arith.addf %151, %173 : vector<8x128xf32>
    %175 = vector.broadcast %166 : vector<8x1xf32> to vector<8x128xf32>
    %176 = vector.broadcast %157 : vector<1x128xf32> to vector<8x128xf32>
    %177 = arith.mulf %175, %176 : vector<8x128xf32>
    %178 = arith.addf %155, %177 : vector<8x128xf32>
    %179 = vector.extract_strided_slice %0 {offsets = [3, 0], sizes = [1, 128], strides = [1, 1]} : vector<4x128xf32> to vector<1x128xf32>
    %180 = arith.mulf %109, %179 : vector<1x128xf32>
    %181 = arith.mulf %6, %8 : vector<8x32xf32>
    %cst_36 = arith.constant dense<0.000000e+00> : vector<8xf32>
    %182 = vector.multi_reduction <add>, %181, %cst_36 [1] : vector<8x32xf32> to vector<8xf32>
    %183 = vector.shape_cast %182 : vector<8xf32> to vector<8x1xf32>
    %184 = arith.mulf %6, %12 : vector<8x32xf32>
    %cst_37 = arith.constant dense<0.000000e+00> : vector<8xf32>
    %185 = vector.multi_reduction <add>, %184, %cst_37 [1] : vector<8x32xf32> to vector<8xf32>
    %186 = vector.shape_cast %185 : vector<8xf32> to vector<8x1xf32>
    %187 = arith.mulf %10, %12 : vector<8x32xf32>
    %cst_38 = arith.constant dense<0.000000e+00> : vector<8xf32>
    %188 = vector.multi_reduction <add>, %187, %cst_38 [1] : vector<8x32xf32> to vector<8xf32>
    %189 = vector.shape_cast %188 : vector<8xf32> to vector<8x1xf32>
    %190 = vector.broadcast %183 : vector<8x1xf32> to vector<8x128xf32>
    %191 = vector.broadcast %180 : vector<1x128xf32> to vector<8x128xf32>
    %192 = arith.mulf %190, %191 : vector<8x128xf32>
    %193 = arith.addf %170, %192 : vector<8x128xf32>
    %194 = vector.broadcast %186 : vector<8x1xf32> to vector<8x128xf32>
    %195 = vector.broadcast %180 : vector<1x128xf32> to vector<8x128xf32>
    %196 = arith.mulf %194, %195 : vector<8x128xf32>
    %197 = arith.addf %174, %196 : vector<8x128xf32>
    %198 = vector.broadcast %189 : vector<8x1xf32> to vector<8x128xf32>
    %199 = vector.broadcast %180 : vector<1x128xf32> to vector<8x128xf32>
    %200 = arith.mulf %198, %199 : vector<8x128xf32>
    %201 = arith.addf %178, %200 : vector<8x128xf32>
    %202 = vector.extract_strided_slice %0 {offsets = [2, 0], sizes = [1, 128], strides = [1, 1]} : vector<4x128xf32> to vector<1x128xf32>
    %203 = vector.extract_strided_slice %0 {offsets = [0, 0], sizes = [1, 128], strides = [1, 1]} : vector<4x128xf32> to vector<1x128xf32>
    %204 = arith.mulf %202, %203 : vector<1x128xf32>
    %205 = arith.mulf %7, %5 : vector<8x32xf32>
    %cst_39 = arith.constant dense<0.000000e+00> : vector<8xf32>
    %206 = vector.multi_reduction <add>, %205, %cst_39 [1] : vector<8x32xf32> to vector<8xf32>
    %207 = vector.shape_cast %206 : vector<8xf32> to vector<8x1xf32>
    %208 = arith.mulf %7, %9 : vector<8x32xf32>
    %cst_40 = arith.constant dense<0.000000e+00> : vector<8xf32>
    %209 = vector.multi_reduction <add>, %208, %cst_40 [1] : vector<8x32xf32> to vector<8xf32>
    %210 = vector.shape_cast %209 : vector<8xf32> to vector<8x1xf32>
    %211 = arith.mulf %11, %9 : vector<8x32xf32>
    %cst_41 = arith.constant dense<0.000000e+00> : vector<8xf32>
    %212 = vector.multi_reduction <add>, %211, %cst_41 [1] : vector<8x32xf32> to vector<8xf32>
    %213 = vector.shape_cast %212 : vector<8xf32> to vector<8x1xf32>
    %214 = vector.broadcast %207 : vector<8x1xf32> to vector<8x128xf32>
    %215 = vector.broadcast %204 : vector<1x128xf32> to vector<8x128xf32>
    %216 = arith.mulf %214, %215 : vector<8x128xf32>
    %217 = arith.addf %193, %216 : vector<8x128xf32>
    %218 = vector.broadcast %210 : vector<8x1xf32> to vector<8x128xf32>
    %219 = vector.broadcast %204 : vector<1x128xf32> to vector<8x128xf32>
    %220 = arith.mulf %218, %219 : vector<8x128xf32>
    %221 = arith.addf %197, %220 : vector<8x128xf32>
    %222 = vector.broadcast %213 : vector<8x1xf32> to vector<8x128xf32>
    %223 = vector.broadcast %204 : vector<1x128xf32> to vector<8x128xf32>
    %224 = arith.mulf %222, %223 : vector<8x128xf32>
    %225 = arith.addf %201, %224 : vector<8x128xf32>
    %226 = vector.extract_strided_slice %0 {offsets = [1, 0], sizes = [1, 128], strides = [1, 1]} : vector<4x128xf32> to vector<1x128xf32>
    %227 = arith.mulf %202, %226 : vector<1x128xf32>
    %228 = arith.mulf %7, %6 : vector<8x32xf32>
    %cst_42 = arith.constant dense<0.000000e+00> : vector<8xf32>
    %229 = vector.multi_reduction <add>, %228, %cst_42 [1] : vector<8x32xf32> to vector<8xf32>
    %230 = vector.shape_cast %229 : vector<8xf32> to vector<8x1xf32>
    %231 = arith.mulf %7, %10 : vector<8x32xf32>
    %cst_43 = arith.constant dense<0.000000e+00> : vector<8xf32>
    %232 = vector.multi_reduction <add>, %231, %cst_43 [1] : vector<8x32xf32> to vector<8xf32>
    %233 = vector.shape_cast %232 : vector<8xf32> to vector<8x1xf32>
    %234 = arith.mulf %11, %10 : vector<8x32xf32>
    %cst_44 = arith.constant dense<0.000000e+00> : vector<8xf32>
    %235 = vector.multi_reduction <add>, %234, %cst_44 [1] : vector<8x32xf32> to vector<8xf32>
    %236 = vector.shape_cast %235 : vector<8xf32> to vector<8x1xf32>
    %237 = vector.broadcast %230 : vector<8x1xf32> to vector<8x128xf32>
    %238 = vector.broadcast %227 : vector<1x128xf32> to vector<8x128xf32>
    %239 = arith.mulf %237, %238 : vector<8x128xf32>
    %240 = arith.addf %217, %239 : vector<8x128xf32>
    %241 = vector.broadcast %233 : vector<8x1xf32> to vector<8x128xf32>
    %242 = vector.broadcast %227 : vector<1x128xf32> to vector<8x128xf32>
    %243 = arith.mulf %241, %242 : vector<8x128xf32>
    %244 = arith.addf %221, %243 : vector<8x128xf32>
    %245 = vector.broadcast %236 : vector<8x1xf32> to vector<8x128xf32>
    %246 = vector.broadcast %227 : vector<1x128xf32> to vector<8x128xf32>
    %247 = arith.mulf %245, %246 : vector<8x128xf32>
    %248 = arith.addf %225, %247 : vector<8x128xf32>
    %249 = vector.extract_strided_slice %0 {offsets = [2, 0], sizes = [1, 128], strides = [1, 1]} : vector<4x128xf32> to vector<1x128xf32>
    %250 = arith.mulf %202, %249 : vector<1x128xf32>
    %251 = arith.mulf %7, %7 : vector<8x32xf32>
    %cst_45 = arith.constant dense<0.000000e+00> : vector<8xf32>
    %252 = vector.multi_reduction <add>, %251, %cst_45 [1] : vector<8x32xf32> to vector<8xf32>
    %253 = vector.shape_cast %252 : vector<8xf32> to vector<8x1xf32>
    %254 = arith.mulf %7, %11 : vector<8x32xf32>
    %cst_46 = arith.constant dense<0.000000e+00> : vector<8xf32>
    %255 = vector.multi_reduction <add>, %254, %cst_46 [1] : vector<8x32xf32> to vector<8xf32>
    %256 = vector.shape_cast %255 : vector<8xf32> to vector<8x1xf32>
    %257 = arith.mulf %11, %11 : vector<8x32xf32>
    %cst_47 = arith.constant dense<0.000000e+00> : vector<8xf32>
    %258 = vector.multi_reduction <add>, %257, %cst_47 [1] : vector<8x32xf32> to vector<8xf32>
    %259 = vector.shape_cast %258 : vector<8xf32> to vector<8x1xf32>
    %260 = vector.broadcast %253 : vector<8x1xf32> to vector<8x128xf32>
    %261 = vector.broadcast %250 : vector<1x128xf32> to vector<8x128xf32>
    %262 = arith.mulf %260, %261 : vector<8x128xf32>
    %263 = arith.addf %240, %262 : vector<8x128xf32>
    %264 = vector.broadcast %256 : vector<8x1xf32> to vector<8x128xf32>
    %265 = vector.broadcast %250 : vector<1x128xf32> to vector<8x128xf32>
    %266 = arith.mulf %264, %265 : vector<8x128xf32>
    %267 = arith.addf %244, %266 : vector<8x128xf32>
    %268 = vector.broadcast %259 : vector<8x1xf32> to vector<8x128xf32>
    %269 = vector.broadcast %250 : vector<1x128xf32> to vector<8x128xf32>
    %270 = arith.mulf %268, %269 : vector<8x128xf32>
    %271 = arith.addf %248, %270 : vector<8x128xf32>
    %272 = vector.extract_strided_slice %0 {offsets = [3, 0], sizes = [1, 128], strides = [1, 1]} : vector<4x128xf32> to vector<1x128xf32>
    %273 = arith.mulf %202, %272 : vector<1x128xf32>
    %274 = arith.mulf %7, %8 : vector<8x32xf32>
    %cst_48 = arith.constant dense<0.000000e+00> : vector<8xf32>
    %275 = vector.multi_reduction <add>, %274, %cst_48 [1] : vector<8x32xf32> to vector<8xf32>
    %276 = vector.shape_cast %275 : vector<8xf32> to vector<8x1xf32>
    %277 = arith.mulf %7, %12 : vector<8x32xf32>
    %cst_49 = arith.constant dense<0.000000e+00> : vector<8xf32>
    %278 = vector.multi_reduction <add>, %277, %cst_49 [1] : vector<8x32xf32> to vector<8xf32>
    %279 = vector.shape_cast %278 : vector<8xf32> to vector<8x1xf32>
    %280 = arith.mulf %11, %12 : vector<8x32xf32>
    %cst_50 = arith.constant dense<0.000000e+00> : vector<8xf32>
    %281 = vector.multi_reduction <add>, %280, %cst_50 [1] : vector<8x32xf32> to vector<8xf32>
    %282 = vector.shape_cast %281 : vector<8xf32> to vector<8x1xf32>
    %283 = vector.broadcast %276 : vector<8x1xf32> to vector<8x128xf32>
    %284 = vector.broadcast %273 : vector<1x128xf32> to vector<8x128xf32>
    %285 = arith.mulf %283, %284 : vector<8x128xf32>
    %286 = arith.addf %263, %285 : vector<8x128xf32>
    %287 = vector.broadcast %279 : vector<8x1xf32> to vector<8x128xf32>
    %288 = vector.broadcast %273 : vector<1x128xf32> to vector<8x128xf32>
    %289 = arith.mulf %287, %288 : vector<8x128xf32>
    %290 = arith.addf %267, %289 : vector<8x128xf32>
    %291 = vector.broadcast %282 : vector<8x1xf32> to vector<8x128xf32>
    %292 = vector.broadcast %273 : vector<1x128xf32> to vector<8x128xf32>
    %293 = arith.mulf %291, %292 : vector<8x128xf32>
    %294 = arith.addf %271, %293 : vector<8x128xf32>
    %295 = vector.extract_strided_slice %0 {offsets = [3, 0], sizes = [1, 128], strides = [1, 1]} : vector<4x128xf32> to vector<1x128xf32>
    %296 = vector.extract_strided_slice %0 {offsets = [0, 0], sizes = [1, 128], strides = [1, 1]} : vector<4x128xf32> to vector<1x128xf32>
    %297 = arith.mulf %295, %296 : vector<1x128xf32>
    %298 = arith.mulf %8, %5 : vector<8x32xf32>
    %cst_51 = arith.constant dense<0.000000e+00> : vector<8xf32>
    %299 = vector.multi_reduction <add>, %298, %cst_51 [1] : vector<8x32xf32> to vector<8xf32>
    %300 = vector.shape_cast %299 : vector<8xf32> to vector<8x1xf32>
    %301 = arith.mulf %8, %9 : vector<8x32xf32>
    %cst_52 = arith.constant dense<0.000000e+00> : vector<8xf32>
    %302 = vector.multi_reduction <add>, %301, %cst_52 [1] : vector<8x32xf32> to vector<8xf32>
    %303 = vector.shape_cast %302 : vector<8xf32> to vector<8x1xf32>
    %304 = arith.mulf %12, %9 : vector<8x32xf32>
    %cst_53 = arith.constant dense<0.000000e+00> : vector<8xf32>
    %305 = vector.multi_reduction <add>, %304, %cst_53 [1] : vector<8x32xf32> to vector<8xf32>
    %306 = vector.shape_cast %305 : vector<8xf32> to vector<8x1xf32>
    %307 = vector.broadcast %300 : vector<8x1xf32> to vector<8x128xf32>
    %308 = vector.broadcast %297 : vector<1x128xf32> to vector<8x128xf32>
    %309 = arith.mulf %307, %308 : vector<8x128xf32>
    %310 = arith.addf %286, %309 : vector<8x128xf32>
    %311 = vector.broadcast %303 : vector<8x1xf32> to vector<8x128xf32>
    %312 = vector.broadcast %297 : vector<1x128xf32> to vector<8x128xf32>
    %313 = arith.mulf %311, %312 : vector<8x128xf32>
    %314 = arith.addf %290, %313 : vector<8x128xf32>
    %315 = vector.broadcast %306 : vector<8x1xf32> to vector<8x128xf32>
    %316 = vector.broadcast %297 : vector<1x128xf32> to vector<8x128xf32>
    %317 = arith.mulf %315, %316 : vector<8x128xf32>
    %318 = arith.addf %294, %317 : vector<8x128xf32>
    %319 = vector.extract_strided_slice %0 {offsets = [1, 0], sizes = [1, 128], strides = [1, 1]} : vector<4x128xf32> to vector<1x128xf32>
    %320 = arith.mulf %295, %319 : vector<1x128xf32>
    %321 = arith.mulf %8, %6 : vector<8x32xf32>
    %cst_54 = arith.constant dense<0.000000e+00> : vector<8xf32>
    %322 = vector.multi_reduction <add>, %321, %cst_54 [1] : vector<8x32xf32> to vector<8xf32>
    %323 = vector.shape_cast %322 : vector<8xf32> to vector<8x1xf32>
    %324 = arith.mulf %8, %10 : vector<8x32xf32>
    %cst_55 = arith.constant dense<0.000000e+00> : vector<8xf32>
    %325 = vector.multi_reduction <add>, %324, %cst_55 [1] : vector<8x32xf32> to vector<8xf32>
    %326 = vector.shape_cast %325 : vector<8xf32> to vector<8x1xf32>
    %327 = arith.mulf %12, %10 : vector<8x32xf32>
    %cst_56 = arith.constant dense<0.000000e+00> : vector<8xf32>
    %328 = vector.multi_reduction <add>, %327, %cst_56 [1] : vector<8x32xf32> to vector<8xf32>
    %329 = vector.shape_cast %328 : vector<8xf32> to vector<8x1xf32>
    %330 = vector.broadcast %323 : vector<8x1xf32> to vector<8x128xf32>
    %331 = vector.broadcast %320 : vector<1x128xf32> to vector<8x128xf32>
    %332 = arith.mulf %330, %331 : vector<8x128xf32>
    %333 = arith.addf %310, %332 : vector<8x128xf32>
    %334 = vector.broadcast %326 : vector<8x1xf32> to vector<8x128xf32>
    %335 = vector.broadcast %320 : vector<1x128xf32> to vector<8x128xf32>
    %336 = arith.mulf %334, %335 : vector<8x128xf32>
    %337 = arith.addf %314, %336 : vector<8x128xf32>
    %338 = vector.broadcast %329 : vector<8x1xf32> to vector<8x128xf32>
    %339 = vector.broadcast %320 : vector<1x128xf32> to vector<8x128xf32>
    %340 = arith.mulf %338, %339 : vector<8x128xf32>
    %341 = arith.addf %318, %340 : vector<8x128xf32>
    %342 = vector.extract_strided_slice %0 {offsets = [2, 0], sizes = [1, 128], strides = [1, 1]} : vector<4x128xf32> to vector<1x128xf32>
    %343 = arith.mulf %295, %342 : vector<1x128xf32>
    %344 = arith.mulf %8, %7 : vector<8x32xf32>
    %cst_57 = arith.constant dense<0.000000e+00> : vector<8xf32>
    %345 = vector.multi_reduction <add>, %344, %cst_57 [1] : vector<8x32xf32> to vector<8xf32>
    %346 = vector.shape_cast %345 : vector<8xf32> to vector<8x1xf32>
    %347 = arith.mulf %8, %11 : vector<8x32xf32>
    %cst_58 = arith.constant dense<0.000000e+00> : vector<8xf32>
    %348 = vector.multi_reduction <add>, %347, %cst_58 [1] : vector<8x32xf32> to vector<8xf32>
    %349 = vector.shape_cast %348 : vector<8xf32> to vector<8x1xf32>
    %350 = arith.mulf %12, %11 : vector<8x32xf32>
    %cst_59 = arith.constant dense<0.000000e+00> : vector<8xf32>
    %351 = vector.multi_reduction <add>, %350, %cst_59 [1] : vector<8x32xf32> to vector<8xf32>
    %352 = vector.shape_cast %351 : vector<8xf32> to vector<8x1xf32>
    %353 = vector.broadcast %346 : vector<8x1xf32> to vector<8x128xf32>
    %354 = vector.broadcast %343 : vector<1x128xf32> to vector<8x128xf32>
    %355 = arith.mulf %353, %354 : vector<8x128xf32>
    %356 = arith.addf %333, %355 : vector<8x128xf32>
    %357 = vector.broadcast %349 : vector<8x1xf32> to vector<8x128xf32>
    %358 = vector.broadcast %343 : vector<1x128xf32> to vector<8x128xf32>
    %359 = arith.mulf %357, %358 : vector<8x128xf32>
    %360 = arith.addf %337, %359 : vector<8x128xf32>
    %361 = vector.broadcast %352 : vector<8x1xf32> to vector<8x128xf32>
    %362 = vector.broadcast %343 : vector<1x128xf32> to vector<8x128xf32>
    %363 = arith.mulf %361, %362 : vector<8x128xf32>
    %364 = arith.addf %341, %363 : vector<8x128xf32>
    %365 = vector.extract_strided_slice %0 {offsets = [3, 0], sizes = [1, 128], strides = [1, 1]} : vector<4x128xf32> to vector<1x128xf32>
    %366 = arith.mulf %295, %365 : vector<1x128xf32>
    %367 = arith.mulf %8, %8 : vector<8x32xf32>
    %cst_60 = arith.constant dense<0.000000e+00> : vector<8xf32>
    %368 = vector.multi_reduction <add>, %367, %cst_60 [1] : vector<8x32xf32> to vector<8xf32>
    %369 = vector.shape_cast %368 : vector<8xf32> to vector<8x1xf32>
    %370 = arith.mulf %8, %12 : vector<8x32xf32>
    %cst_61 = arith.constant dense<0.000000e+00> : vector<8xf32>
    %371 = vector.multi_reduction <add>, %370, %cst_61 [1] : vector<8x32xf32> to vector<8xf32>
    %372 = vector.shape_cast %371 : vector<8xf32> to vector<8x1xf32>
    %373 = arith.mulf %12, %12 : vector<8x32xf32>
    %cst_62 = arith.constant dense<0.000000e+00> : vector<8xf32>
    %374 = vector.multi_reduction <add>, %373, %cst_62 [1] : vector<8x32xf32> to vector<8xf32>
    %375 = vector.shape_cast %374 : vector<8xf32> to vector<8x1xf32>
    %376 = vector.broadcast %369 : vector<8x1xf32> to vector<8x128xf32>
    %377 = vector.broadcast %366 : vector<1x128xf32> to vector<8x128xf32>
    %378 = arith.mulf %376, %377 : vector<8x128xf32>
    %379 = arith.addf %356, %378 : vector<8x128xf32>
    %380 = vector.broadcast %372 : vector<8x1xf32> to vector<8x128xf32>
    %381 = vector.broadcast %366 : vector<1x128xf32> to vector<8x128xf32>
    %382 = arith.mulf %380, %381 : vector<8x128xf32>
    %383 = arith.addf %360, %382 : vector<8x128xf32>
    %384 = vector.broadcast %375 : vector<8x1xf32> to vector<8x128xf32>
    %385 = vector.broadcast %366 : vector<1x128xf32> to vector<8x128xf32>
    %386 = arith.mulf %384, %385 : vector<8x128xf32>
    %387 = arith.addf %364, %386 : vector<8x128xf32>
    %388 = vector.extract_strided_slice %0 {offsets = [0, 0], sizes = [1, 128], strides = [1, 1]} : vector<4x128xf32> to vector<1x128xf32>
    %389 = arith.mulf %1, %388 : vector<1x128xf32>
    %cst_63 = arith.constant dense<0.000000e+00> : vector<8xf32>
    %390 = vector.multi_reduction <add>, %5, %cst_63 [1] : vector<8x32xf32> to vector<8xf32>
    %391 = vector.shape_cast %390 : vector<8xf32> to vector<8x1xf32>
    %cst_64 = arith.constant dense<0.000000e+00> : vector<8xf32>
    %392 = vector.multi_reduction <add>, %9, %cst_64 [1] : vector<8x32xf32> to vector<8xf32>
    %393 = vector.shape_cast %392 : vector<8xf32> to vector<8x1xf32>
    %394 = vector.broadcast %391 : vector<8x1xf32> to vector<8x128xf32>
    %395 = vector.broadcast %389 : vector<1x128xf32> to vector<8x128xf32>
    %396 = arith.mulf %394, %395 : vector<8x128xf32>
    %cst_65 = arith.constant 2.000000e+00 : f32
    %397 = vector.broadcast %cst_65 : f32 to vector<8x128xf32>
    %398 = arith.mulf %397, %396 : vector<8x128xf32>
    %399 = arith.addf %379, %398 : vector<8x128xf32>
    %400 = vector.broadcast %393 : vector<8x1xf32> to vector<8x128xf32>
    %401 = vector.broadcast %389 : vector<1x128xf32> to vector<8x128xf32>
    %402 = arith.mulf %400, %401 : vector<8x128xf32>
    %cst_66 = arith.constant 2.000000e+00 : f32
    %403 = vector.broadcast %cst_66 : f32 to vector<8x128xf32>
    %404 = arith.mulf %403, %402 : vector<8x128xf32>
    %405 = arith.addf %387, %404 : vector<8x128xf32>
    %406 = arith.addf %391, %393 : vector<8x1xf32>
    %407 = vector.broadcast %406 : vector<8x1xf32> to vector<8x128xf32>
    %408 = vector.broadcast %389 : vector<1x128xf32> to vector<8x128xf32>
    %409 = arith.mulf %407, %408 : vector<8x128xf32>
    %410 = arith.addf %383, %409 : vector<8x128xf32>
    %411 = vector.extract_strided_slice %0 {offsets = [1, 0], sizes = [1, 128], strides = [1, 1]} : vector<4x128xf32> to vector<1x128xf32>
    %412 = arith.mulf %1, %411 : vector<1x128xf32>
    %cst_67 = arith.constant dense<0.000000e+00> : vector<8xf32>
    %413 = vector.multi_reduction <add>, %6, %cst_67 [1] : vector<8x32xf32> to vector<8xf32>
    %414 = vector.shape_cast %413 : vector<8xf32> to vector<8x1xf32>
    %cst_68 = arith.constant dense<0.000000e+00> : vector<8xf32>
    %415 = vector.multi_reduction <add>, %10, %cst_68 [1] : vector<8x32xf32> to vector<8xf32>
    %416 = vector.shape_cast %415 : vector<8xf32> to vector<8x1xf32>
    %417 = vector.broadcast %414 : vector<8x1xf32> to vector<8x128xf32>
    %418 = vector.broadcast %412 : vector<1x128xf32> to vector<8x128xf32>
    %419 = arith.mulf %417, %418 : vector<8x128xf32>
    %cst_69 = arith.constant 2.000000e+00 : f32
    %420 = vector.broadcast %cst_69 : f32 to vector<8x128xf32>
    %421 = arith.mulf %420, %419 : vector<8x128xf32>
    %422 = arith.addf %399, %421 : vector<8x128xf32>
    %423 = vector.broadcast %416 : vector<8x1xf32> to vector<8x128xf32>
    %424 = vector.broadcast %412 : vector<1x128xf32> to vector<8x128xf32>
    %425 = arith.mulf %423, %424 : vector<8x128xf32>
    %cst_70 = arith.constant 2.000000e+00 : f32
    %426 = vector.broadcast %cst_70 : f32 to vector<8x128xf32>
    %427 = arith.mulf %426, %425 : vector<8x128xf32>
    %428 = arith.addf %405, %427 : vector<8x128xf32>
    %429 = arith.addf %414, %416 : vector<8x1xf32>
    %430 = vector.broadcast %429 : vector<8x1xf32> to vector<8x128xf32>
    %431 = vector.broadcast %412 : vector<1x128xf32> to vector<8x128xf32>
    %432 = arith.mulf %430, %431 : vector<8x128xf32>
    %433 = arith.addf %410, %432 : vector<8x128xf32>
    %434 = vector.extract_strided_slice %0 {offsets = [2, 0], sizes = [1, 128], strides = [1, 1]} : vector<4x128xf32> to vector<1x128xf32>
    %435 = arith.mulf %1, %434 : vector<1x128xf32>
    %cst_71 = arith.constant dense<0.000000e+00> : vector<8xf32>
    %436 = vector.multi_reduction <add>, %7, %cst_71 [1] : vector<8x32xf32> to vector<8xf32>
    %437 = vector.shape_cast %436 : vector<8xf32> to vector<8x1xf32>
    %cst_72 = arith.constant dense<0.000000e+00> : vector<8xf32>
    %438 = vector.multi_reduction <add>, %11, %cst_72 [1] : vector<8x32xf32> to vector<8xf32>
    %439 = vector.shape_cast %438 : vector<8xf32> to vector<8x1xf32>
    %440 = vector.broadcast %437 : vector<8x1xf32> to vector<8x128xf32>
    %441 = vector.broadcast %435 : vector<1x128xf32> to vector<8x128xf32>
    %442 = arith.mulf %440, %441 : vector<8x128xf32>
    %cst_73 = arith.constant 2.000000e+00 : f32
    %443 = vector.broadcast %cst_73 : f32 to vector<8x128xf32>
    %444 = arith.mulf %443, %442 : vector<8x128xf32>
    %445 = arith.addf %422, %444 : vector<8x128xf32>
    %446 = vector.broadcast %439 : vector<8x1xf32> to vector<8x128xf32>
    %447 = vector.broadcast %435 : vector<1x128xf32> to vector<8x128xf32>
    %448 = arith.mulf %446, %447 : vector<8x128xf32>
    %cst_74 = arith.constant 2.000000e+00 : f32
    %449 = vector.broadcast %cst_74 : f32 to vector<8x128xf32>
    %450 = arith.mulf %449, %448 : vector<8x128xf32>
    %451 = arith.addf %428, %450 : vector<8x128xf32>
    %452 = arith.addf %437, %439 : vector<8x1xf32>
    %453 = vector.broadcast %452 : vector<8x1xf32> to vector<8x128xf32>
    %454 = vector.broadcast %435 : vector<1x128xf32> to vector<8x128xf32>
    %455 = arith.mulf %453, %454 : vector<8x128xf32>
    %456 = arith.addf %433, %455 : vector<8x128xf32>
    %457 = vector.extract_strided_slice %0 {offsets = [3, 0], sizes = [1, 128], strides = [1, 1]} : vector<4x128xf32> to vector<1x128xf32>
    %458 = arith.mulf %1, %457 : vector<1x128xf32>
    %cst_75 = arith.constant dense<0.000000e+00> : vector<8xf32>
    %459 = vector.multi_reduction <add>, %8, %cst_75 [1] : vector<8x32xf32> to vector<8xf32>
    %460 = vector.shape_cast %459 : vector<8xf32> to vector<8x1xf32>
    %cst_76 = arith.constant dense<0.000000e+00> : vector<8xf32>
    %461 = vector.multi_reduction <add>, %12, %cst_76 [1] : vector<8x32xf32> to vector<8xf32>
    %462 = vector.shape_cast %461 : vector<8xf32> to vector<8x1xf32>
    %463 = vector.broadcast %460 : vector<8x1xf32> to vector<8x128xf32>
    %464 = vector.broadcast %458 : vector<1x128xf32> to vector<8x128xf32>
    %465 = arith.mulf %463, %464 : vector<8x128xf32>
    %cst_77 = arith.constant 2.000000e+00 : f32
    %466 = vector.broadcast %cst_77 : f32 to vector<8x128xf32>
    %467 = arith.mulf %466, %465 : vector<8x128xf32>
    %468 = arith.addf %445, %467 : vector<8x128xf32>
    %469 = vector.broadcast %462 : vector<8x1xf32> to vector<8x128xf32>
    %470 = vector.broadcast %458 : vector<1x128xf32> to vector<8x128xf32>
    %471 = arith.mulf %469, %470 : vector<8x128xf32>
    %cst_78 = arith.constant 2.000000e+00 : f32
    %472 = vector.broadcast %cst_78 : f32 to vector<8x128xf32>
    %473 = arith.mulf %472, %471 : vector<8x128xf32>
    %474 = arith.addf %451, %473 : vector<8x128xf32>
    %475 = arith.addf %460, %462 : vector<8x1xf32>
    %476 = vector.broadcast %475 : vector<8x1xf32> to vector<8x128xf32>
    %477 = vector.broadcast %458 : vector<1x128xf32> to vector<8x128xf32>
    %478 = arith.mulf %476, %477 : vector<8x128xf32>
    %479 = arith.addf %456, %478 : vector<8x128xf32>
    %480 = vector.broadcast %4 : vector<1x128xf32> to vector<8x128xf32>
    %481 = arith.addf %479, %480 : vector<8x128xf32>
    %482 = vector.broadcast %4 : vector<1x128xf32> to vector<8x128xf32>
    %483 = arith.addf %468, %482 : vector<8x128xf32>
    %484 = vector.broadcast %4 : vector<1x128xf32> to vector<8x128xf32>
    %485 = arith.addf %474, %484 : vector<8x128xf32>
    %cst_79 = arith.constant 1.000000e-16 : f32
    %486 = vector.broadcast %cst_79 : f32 to vector<8x128xf32>
    %487 = arith.maximumf %483, %486 : vector<8x128xf32>
    %488 = math.rsqrt %487 : vector<8x128xf32>
    %cst_80 = arith.constant 1.000000e-16 : f32
    %489 = vector.broadcast %cst_80 : f32 to vector<8x128xf32>
    %490 = arith.maximumf %485, %489 : vector<8x128xf32>
    %491 = math.rsqrt %490 : vector<8x128xf32>
    %492 = arith.mulf %481, %488 : vector<8x128xf32>
    %493 = arith.mulf %492, %491 : vector<8x128xf32>
    %c0_81 = arith.constant 0 : index
    %c0_82 = arith.constant 0 : index
    %494 = vector.load %arg4[%c0_81, %c0_82] : memref<8x128xf32, #tpu.memory_space<vmem>>, vector<8x128xf32>
    tpu.vector_store %arg4[%c0_81, %c0_82], %493 {strides = array<i32>} : memref<8x128xf32, #tpu.memory_space<vmem>>, vector<8x128xf32>,
    return
  }
  func.func @transform_0(%arg0: i32) -> (i32, i32) {
    %c0_i32 = arith.constant 0 : i32
    %c0_i32_0 = arith.constant 0 : i32
    %c0_i32_1 = arith.constant 0 : i32
    return %c0_i32, %c0_i32_0 : i32, i32
  }
  func.func @transform_1(%arg0: i32) -> (i32, i32) {
    %c0_i32 = arith.constant 0 : i32
    %c0_i32_0 = arith.constant 0 : i32
    %c0_i32_1 = arith.constant 0 : i32
    return %c0_i32, %c0_i32_0 : i32, i32
  }
  func.func @transform_2(%arg0: i32) -> (i32, i32) {
    %c0_i32 = arith.constant 0 : i32
    %c0_i32_0 = arith.constant 0 : i32
    return %arg0, %c0_i32 : i32, i32
  }
  func.func @transform_3(%arg0: i32) -> (i32, i32) {
    %c0_i32 = arith.constant 0 : i32
    %c0_i32_0 = arith.constant 0 : i32
    return %arg0, %c0_i32 : i32, i32
  }
}

</mosaic_0001>

<llo_original>
// kernel: tpu_custom_call.1
$region0: #{tpu_custom_call.1}
  #allocation0 [shape = 'u32[]', space=smem, size = 0x4, offset = 0x4, fixed_abs, tag = 'smem constant byte address 0x4 - core index']
  #allocation1 [shape = 'u32[144,128]{1,0:T(1,128)}', space=vmem, size = 0x12000, scoped, tag = 'internal scratch']
  %s0 = inlined_call_operand.hbm [shape: f32[4,128], index: 0, kind: input, shape index: {}]
  %s1 = inlined_call_operand.vmem [shape: f32[1,128], index: 1, kind: input, shape index: {}]
  %s2 = inlined_call_operand.hbm [shape: f32[8,256], index: 2, kind: input, shape index: {}]
  %s3 = inlined_call_operand.hbm [shape: f32[8,128], index: 3, kind: output, shape index: {}]
  %s4 = sld [smem:[#allocation0]]
  $region30: #{tpu_custom_call.1} parent=0
    _
  %s6 = ssub.s32 1, %s4
  %s7 = scalar_select 0, %s6, %s4
  $region1: #{tpu_custom_call.1} parent=0
    #allocation2 [shape = 'u8[2048]{0}', space=vmem, size = 0x800, scoped, tag = 'input window, operand 0, single buffered']
    #allocation3 [shape = 's32[1]{0}', space=sflag, size = 0x4, scoped, tag = 'scoped memory for tpu_custom_call.1']
    #allocation4 [shape = 's32[1]{0}', space=sflag, size = 0x4, scoped, tag = 'scoped memory for tpu_custom_call.1']
    #allocation5 [shape = 'u8[8192]{0}', space=vmem, size = 0x2000, scoped, tag = 'input window, operand 2, single buffered']
    #allocation6 [shape = 's32[1]{0}', space=sflag, size = 0x4, scoped, tag = 'scoped memory for tpu_custom_call.1']
    #allocation7 [shape = 'u8[4096]{0}', space=vmem, size = 0x1000, scoped, tag = 'output window, operand 0, single buffered']
    %8 = vsyncpa [#allocation3], 0
    %9 = vsyncpa [#allocation6], 0
    %10 = vsyncpa [#allocation4], 0
    // Predicated region
    $region2: #{tpu_custom_call.1} parent=1 // pred_check
      _
    $region3: #{tpu_custom_call.1} parent=1 // pred_check_branch
      %12 = sbr.rel (0) target = $region5
    $region4: #{tpu_custom_call.1} parent=1 // pred_region
      %s14 = ssub.s32 64, 64
      %15 = vsyncadd [#allocation3], %s14
      %s17 = sshll.u32 [#allocation2], 4
      %s18 = int_to_ptr.vmem [resolvable:$true] %s17
      %20 = dma.hbm_to_vmem [thread:$0]  %s0, 64, %s18, [#allocation3]
    $region5: #{tpu_custom_call.1} parent=1 // pred_fallthru
      _
    // Predicated region
    $region6: #{tpu_custom_call.1} parent=1 // pred_check
      _
    $region7: #{tpu_custom_call.1} parent=1 // pred_check_branch
      %22 = sbr.rel (0) target = $region9
    $region8: #{tpu_custom_call.1} parent=1 // pred_region
      _
    $region9: #{tpu_custom_call.1} parent=1 // pred_fallthru
      _
    // Predicated region
    $region10: #{tpu_custom_call.1} parent=1 // pred_check
      _
    $region11: #{tpu_custom_call.1} parent=1 // pred_check_branch
      %24 = sbr.rel (0) target = $region13
    $region12: #{tpu_custom_call.1} parent=1 // pred_region
      %s26 = ssub.s32 256, 256
      %27 = vsyncadd [#allocation6], %s26
      %s29 = sshll.u32 [#allocation5], 4
      %s30 = int_to_ptr.vmem [resolvable:$true] %s29
      %32 = dma.hbm_to_vmem [thread:$0]  %s2, 256, %s30, [#allocation6]
    $region13: #{tpu_custom_call.1} parent=1 // pred_fallthru
      _
    // Predicated region
    $region14: #{tpu_custom_call.1} parent=1 // pred_check
      _
    $region15: #{tpu_custom_call.1} parent=1 // pred_check_branch
      %34 = sbr.rel (0) target = $region17
    $region16: #{tpu_custom_call.1} parent=1 // pred_region
      %35 = dma.done [#allocation3], 64
    $region17: #{tpu_custom_call.1} parent=1 // pred_fallthru
      _
    // Predicated region
    $region18: #{tpu_custom_call.1} parent=1 // pred_check
      _
    $region19: #{tpu_custom_call.1} parent=1 // pred_check_branch
      %37 = sbr.rel (0) target = $region21
    $region20: #{tpu_custom_call.1} parent=1 // pred_region
      %38 = dma.done [#allocation6], 256
    $region21: #{tpu_custom_call.1} parent=1 // pred_fallthru
      _
    %v39 = vld [vmem:[#allocation2] sm:$0xf]
    %v40 = vld [vmem:[%s1] sm:$0x1]
    %v41 = vmul.f32 %v40, 32.0
    %v42 = vmul.f32 %v41, %v40
    %v43 = vld [vmem:[#allocation5] sm:$0xff]
    %v44 = vld [vmem:[#allocation5 + $0x8] sm:$0xff]
    %v45 = vmul.f32 %v39, %v39
    %v46 = vmul.f32 %v43, %v43
    %vm47 = vcmask 261120
    %v48 = vsel %vm47, %v46, 0.0
    %49 = vadd.xlane.f32.xlu0 %v48
    %v50 = vpop.xlane.xlu0 %49
    %v51 = vmul.f32 %v43, %v44
    %v52 = vsel %vm47, %v51, 0.0
    %53 = vadd.xlane.f32.xlu0 %v52
    %v54 = vpop.xlane.xlu0 %53
    %v55 = vmul.f32 %v44, %v44
    %v56 = vsel %vm47, %v55, 0.0
    %57 = vadd.xlane.f32.xlu0 %v56
    %v58 = vpop.xlane.xlu0 %57
    %v59 = vlaneseq
    %v60 = vshrl.u32 %v59, 7
    %v61 = vsub.s32 0, %v60
    %v62 = vrot.slane %v45, %v61
    %v63 = vmul.f32 %v50, %v62
    %v64 = vadd.f32 %v63, 0.0
    %v65 = vmul.f32 %v54, %v62
    %v66 = vadd.f32 %v65, 0.0
    %v67 = vmul.f32 %v58, %v62
    %v68 = vadd.f32 %v67, 0.0
    %v70 = vrot.slane %v39, 1
    %v72 = vmul.f32 %v39, %v70
    %74 = vrot.lane.b32.xlu0 %v43, 96
    %v75 = vpop.permute.xlu0 %74
    %v77 = vmul.f32 %v43, %v75
    %v78 = vsel %vm47, %v77, 0.0
    %79 = vadd.xlane.f32.xlu0 %v78
    %v80 = vpop.xlane.xlu0 %79
    %82 = vrot.lane.b32.xlu0 %v44, 96
    %v83 = vpop.permute.xlu0 %82
    %v85 = vmul.f32 %v43, %v83
    %v86 = vsel %vm47, %v85, 0.0
    %87 = vadd.xlane.f32.xlu0 %v86
    %v88 = vpop.xlane.xlu0 %87
    %v89 = vmul.f32 %v44, %v83
    %v90 = vsel %vm47, %v89, 0.0
    %91 = vadd.xlane.f32.xlu0 %v90
    %v92 = vpop.xlane.xlu0 %91
    %v93 = vlaneseq
    %v94 = vshrl.u32 %v93, 7
    %v95 = vsub.s32 0, %v94
    %v96 = vrot.slane %v72, %v95
    %v97 = vmul.f32 %v80, %v96
    %v98 = vadd.f32 %v64, %v97
    %v99 = vmul.f32 %v88, %v96
    %v100 = vadd.f32 %v66, %v99
    %v101 = vmul.f32 %v92, %v96
    %v102 = vadd.f32 %v68, %v101
    %v103 = vrot.slane %v39, 2
    %v105 = vmul.f32 %v39, %v103
    %106 = vrot.lane.b32.xlu0 %v43, 64
    %v107 = vpop.permute.xlu0 %106
    %v109 = vmul.f32 %v43, %v107
    %v110 = vsel %vm47, %v109, 0.0
    %111 = vadd.xlane.f32.xlu0 %v110
    %v112 = vpop.xlane.xlu0 %111
    %113 = vrot.lane.b32.xlu0 %v44, 64
    %v114 = vpop.permute.xlu0 %113
    %v116 = vmul.f32 %v43, %v114
    %v117 = vsel %vm47, %v116, 0.0
    %118 = vadd.xlane.f32.xlu0 %v117
    %v119 = vpop.xlane.xlu0 %118
    %v120 = vmul.f32 %v44, %v114
    %v121 = vsel %vm47, %v120, 0.0
    %122 = vadd.xlane.f32.xlu0 %v121
    %v123 = vpop.xlane.xlu0 %122
    %v124 = vlaneseq
    %v125 = vshrl.u32 %v124, 7
    %v126 = vsub.s32 0, %v125
    %v127 = vrot.slane %v105, %v126
    %v128 = vmul.f32 %v112, %v127
    %v129 = vadd.f32 %v98, %v128
    %v130 = vmul.f32 %v119, %v127
    %v131 = vadd.f32 %v100, %v130
    %v132 = vmul.f32 %v123, %v127
    %v133 = vadd.f32 %v102, %v132
    %v134 = vrot.slane %v39, 3
    %v136 = vmul.f32 %v39, %v134
    %137 = vrot.lane.b32.xlu0 %v43, 32
    %v138 = vpop.permute.xlu0 %137
    %v140 = vmul.f32 %v43, %v138
    %v141 = vsel %vm47, %v140, 0.0
    %142 = vadd.xlane.f32.xlu0 %v141
    %v143 = vpop.xlane.xlu0 %142
    %144 = vrot.lane.b32.xlu0 %v44, 32
    %v145 = vpop.permute.xlu0 %144
    %v147 = vmul.f32 %v43, %v145
    %v148 = vsel %vm47, %v147, 0.0
    %149 = vadd.xlane.f32.xlu0 %v148
    %v150 = vpop.xlane.xlu0 %149
    %v151 = vmul.f32 %v44, %v145
    %v152 = vsel %vm47, %v151, 0.0
    %153 = vadd.xlane.f32.xlu0 %v152
    %v154 = vpop.xlane.xlu0 %153
    %v155 = vlaneseq
    %v156 = vshrl.u32 %v155, 7
    %v157 = vsub.s32 0, %v156
    %v158 = vrot.slane %v136, %v157
    %v159 = vmul.f32 %v143, %v158
    %v160 = vadd.f32 %v129, %v159
    %v161 = vmul.f32 %v150, %v158
    %v162 = vadd.f32 %v131, %v161
    %v163 = vmul.f32 %v154, %v158
    %v164 = vadd.f32 %v133, %v163
    %166 = vrot.lane.b32.xlu0 %v147, 96
    %v167 = vpop.permute.xlu0 %166
    %v169 = vsel %vm47, %v167, 0.0
    %170 = vadd.xlane.f32.xlu0 %v169
    %v171 = vpop.xlane.xlu0 %170
    %v172 = vadd.f32 %v160, %v97
    %v173 = vmul.f32 %v171, %v96
    %v174 = vadd.f32 %v162, %v173
    %v175 = vadd.f32 %v164, %v101
    %177 = vrot.lane.b32.xlu0 %v46, 96
    %v178 = vpop.permute.xlu0 %177
    %v180 = vsel %vm47, %v178, 0.0
    %181 = vadd.xlane.f32.xlu0 %v180
    %v182 = vpop.xlane.xlu0 %181
    %184 = vrot.lane.b32.xlu0 %v51, 96
    %v185 = vpop.permute.xlu0 %184
    %v187 = vsel %vm47, %v185, 0.0
    %188 = vadd.xlane.f32.xlu0 %v187
    %v189 = vpop.xlane.xlu0 %188
    %191 = vrot.lane.b32.xlu0 %v55, 96
    %v192 = vpop.permute.xlu0 %191
    %v194 = vsel %vm47, %v192, 0.0
    %195 = vadd.xlane.f32.xlu0 %v194
    %v196 = vpop.xlane.xlu0 %195
    %v197 = vlaneseq
    %v198 = vshrl.u32 %v197, 7
    %v199 = vsub.s32 1, %v198
    %v200 = vrot.slane %v45, %v199
    %v201 = vmul.f32 %v182, %v200
    %v202 = vadd.f32 %v172, %v201
    %v203 = vmul.f32 %v189, %v200
    %v204 = vadd.f32 %v174, %v203
    %v205 = vmul.f32 %v196, %v200
    %v206 = vadd.f32 %v175, %v205
    %208 = vrot.lane.b32.xlu0 %v77, 96
    %v209 = vpop.permute.xlu0 %208
    %v211 = vsel %vm47, %v209, 0.0
    %212 = vadd.xlane.f32.xlu0 %v211
    %v213 = vpop.xlane.xlu0 %212
    %215 = vrot.lane.b32.xlu0 %v85, 96
    %v216 = vpop.permute.xlu0 %215
    %v218 = vsel %vm47, %v216, 0.0
    %219 = vadd.xlane.f32.xlu0 %v218
    %v220 = vpop.xlane.xlu0 %219
    %222 = vrot.lane.b32.xlu0 %v89, 96
    %v223 = vpop.permute.xlu0 %222
    %v225 = vsel %vm47, %v223, 0.0
    %226 = vadd.xlane.f32.xlu0 %v225
    %v227 = vpop.xlane.xlu0 %226
    %v228 = vlaneseq
    %v229 = vshrl.u32 %v228, 7
    %v230 = vsub.s32 1, %v229
    %v231 = vrot.slane %v72, %v230
    %v232 = vmul.f32 %v213, %v231
    %v233 = vadd.f32 %v202, %v232
    %v234 = vmul.f32 %v220, %v231
    %v235 = vadd.f32 %v204, %v234
    %v236 = vmul.f32 %v227, %v231
    %v237 = vadd.f32 %v206, %v236
    %239 = vrot.lane.b32.xlu0 %v109, 96
    %v240 = vpop.permute.xlu0 %239
    %v242 = vsel %vm47, %v240, 0.0
    %243 = vadd.xlane.f32.xlu0 %v242
    %v244 = vpop.xlane.xlu0 %243
    %246 = vrot.lane.b32.xlu0 %v116, 96
    %v247 = vpop.permute.xlu0 %246
    %v249 = vsel %vm47, %v247, 0.0
    %250 = vadd.xlane.f32.xlu0 %v249
    %v251 = vpop.xlane.xlu0 %250
    %253 = vrot.lane.b32.xlu0 %v120, 96
    %v254 = vpop.permute.xlu0 %253
    %v256 = vsel %vm47, %v254, 0.0
    %257 = vadd.xlane.f32.xlu0 %v256
    %v258 = vpop.xlane.xlu0 %257
    %v259 = vlaneseq
    %v260 = vshrl.u32 %v259, 7
    %v261 = vsub.s32 1, %v260
    %v262 = vrot.slane %v105, %v261
    %v263 = vmul.f32 %v244, %v262
    %v264 = vadd.f32 %v233, %v263
    %v265 = vmul.f32 %v251, %v262
    %v266 = vadd.f32 %v235, %v265
    %v267 = vmul.f32 %v258, %v262
    %v268 = vadd.f32 %v237, %v267
    %269 = vrot.lane.b32.xlu0 %v116, 64
    %v270 = vpop.permute.xlu0 %269
    %v272 = vsel %vm47, %v270, 0.0
    %273 = vadd.xlane.f32.xlu0 %v272
    %v274 = vpop.xlane.xlu0 %273
    %v275 = vadd.f32 %v264, %v128
    %v276 = vmul.f32 %v274, %v127
    %v277 = vadd.f32 %v266, %v276
    %v278 = vadd.f32 %v268, %v132
    %279 = vrot.lane.b32.xlu0 %v147, 64
    %v280 = vpop.permute.xlu0 %279
    %v282 = vsel %vm47, %v280, 0.0
    %283 = vadd.xlane.f32.xlu0 %v282
    %v284 = vpop.xlane.xlu0 %283
    %v285 = vadd.f32 %v275, %v232
    %v286 = vmul.f32 %v284, %v231
    %v287 = vadd.f32 %v277, %v286
    %v288 = vadd.f32 %v278, %v236
    %289 = vrot.lane.b32.xlu0 %v46, 64
    %v290 = vpop.permute.xlu0 %289
    %v292 = vsel %vm47, %v290, 0.0
    %293 = vadd.xlane.f32.xlu0 %v292
    %v294 = vpop.xlane.xlu0 %293
    %295 = vrot.lane.b32.xlu0 %v51, 64
    %v296 = vpop.permute.xlu0 %295
    %v298 = vsel %vm47, %v296, 0.0
    %299 = vadd.xlane.f32.xlu0 %v298
    %v300 = vpop.xlane.xlu0 %299
    %301 = vrot.lane.b32.xlu0 %v55, 64
    %v302 = vpop.permute.xlu0 %301
    %v304 = vsel %vm47, %v302, 0.0
    %305 = vadd.xlane.f32.xlu0 %v304
    %v306 = vpop.xlane.xlu0 %305
    %v307 = vlaneseq
    %v308 = vshrl.u32 %v307, 7
    %v309 = vsub.s32 2, %v308
    %v310 = vrot.slane %v45, %v309
    %v311 = vmul.f32 %v294, %v310
    %v312 = vadd.f32 %v285, %v311
    %v313 = vmul.f32 %v300, %v310
    %v314 = vadd.f32 %v287, %v313
    %v315 = vmul.f32 %v306, %v310
    %v316 = vadd.f32 %v288, %v315
    %317 = vrot.lane.b32.xlu0 %v77, 64
    %v318 = vpop.permute.xlu0 %317
    %v320 = vsel %vm47, %v318, 0.0
    %321 = vadd.xlane.f32.xlu0 %v320
    %v322 = vpop.xlane.xlu0 %321
    %323 = vrot.lane.b32.xlu0 %v85, 64
    %v324 = vpop.permute.xlu0 %323
    %v326 = vsel %vm47, %v324, 0.0
    %327 = vadd.xlane.f32.xlu0 %v326
    %v328 = vpop.xlane.xlu0 %327
    %329 = vrot.lane.b32.xlu0 %v89, 64
    %v330 = vpop.permute.xlu0 %329
    %v332 = vsel %vm47, %v330, 0.0
    %333 = vadd.xlane.f32.xlu0 %v332
    %v334 = vpop.xlane.xlu0 %333
    %v335 = vlaneseq
    %v336 = vshrl.u32 %v335, 7
    %v337 = vsub.s32 2, %v336
    %v338 = vrot.slane %v72, %v337
    %v339 = vmul.f32 %v322, %v338
    %v340 = vadd.f32 %v312, %v339
    %v341 = vmul.f32 %v328, %v338
    %v342 = vadd.f32 %v314, %v341
    %v343 = vmul.f32 %v334, %v338
    %v344 = vadd.f32 %v316, %v343
    %345 = vrot.lane.b32.xlu0 %v85, 32
    %v346 = vpop.permute.xlu0 %345
    %v348 = vsel %vm47, %v346, 0.0
    %349 = vadd.xlane.f32.xlu0 %v348
    %v350 = vpop.xlane.xlu0 %349
    %v351 = vadd.f32 %v340, %v159
    %v352 = vmul.f32 %v350, %v158
    %v353 = vadd.f32 %v342, %v352
    %v354 = vadd.f32 %v344, %v163
    %355 = vrot.lane.b32.xlu0 %v116, 32
    %v356 = vpop.permute.xlu0 %355
    %v358 = vsel %vm47, %v356, 0.0
    %359 = vadd.xlane.f32.xlu0 %v358
    %v360 = vpop.xlane.xlu0 %359
    %v361 = vadd.f32 %v351, %v263
    %v362 = vmul.f32 %v360, %v262
    %v363 = vadd.f32 %v353, %v362
    %v364 = vadd.f32 %v354, %v267
    %365 = vrot.lane.b32.xlu0 %v147, 32
    %v366 = vpop.permute.xlu0 %365
    %v368 = vsel %vm47, %v366, 0.0
    %369 = vadd.xlane.f32.xlu0 %v368
    %v370 = vpop.xlane.xlu0 %369
    %v371 = vadd.f32 %v361, %v339
    %v372 = vmul.f32 %v370, %v338
    %v373 = vadd.f32 %v363, %v372
    %v374 = vadd.f32 %v364, %v343
    %375 = vrot.lane.b32.xlu0 %v46, 32
    %v376 = vpop.permute.xlu0 %375
    %v378 = vsel %vm47, %v376, 0.0
    %379 = vadd.xlane.f32.xlu0 %v378
    %v380 = vpop.xlane.xlu0 %379
    %381 = vrot.lane.b32.xlu0 %v51, 32
    %v382 = vpop.permute.xlu0 %381
    %v384 = vsel %vm47, %v382, 0.0
    %385 = vadd.xlane.f32.xlu0 %v384
    %v386 = vpop.xlane.xlu0 %385
    %387 = vrot.lane.b32.xlu0 %v55, 32
    %v388 = vpop.permute.xlu0 %387
    %v390 = vsel %vm47, %v388, 0.0
    %391 = vadd.xlane.f32.xlu0 %v390
    %v392 = vpop.xlane.xlu0 %391
    %v393 = vlaneseq
    %v394 = vshrl.u32 %v393, 7
    %v395 = vsub.s32 3, %v394
    %v396 = vrot.slane %v45, %v395
    %v397 = vmul.f32 %v380, %v396
    %v398 = vadd.f32 %v371, %v397
    %v399 = vmul.f32 %v386, %v396
    %v400 = vadd.f32 %v373, %v399
    %v401 = vmul.f32 %v392, %v396
    %v402 = vadd.f32 %v374, %v401
    %v403 = vmul.f32 %v40, %v39
    %v404 = vsel %vm47, %v43, 0.0
    %405 = vadd.xlane.f32.xlu0 %v404
    %v406 = vpop.xlane.xlu0 %405
    %v407 = vsel %vm47, %v44, 0.0
    %408 = vadd.xlane.f32.xlu0 %v407
    %v409 = vpop.xlane.xlu0 %408
    %v411 = vlaneseq
    %v412 = vshrl.u32 %v411, 7
    %v413 = vsub.s32 0, %v412
    %v414 = vrot.slane %v403, %v413
    %v416 = vmul.f32 %v406, %v414
    %v417 = vmul.f32 %v416, 2.0
    %v418 = vadd.f32 %v398, %v417
    %v419 = vmul.f32 %v409, %v414
    %v420 = vmul.f32 %v419, 2.0
    %v421 = vadd.f32 %v402, %v420
    %v422 = vadd.f32 %v406, %v409
    %v423 = vmul.f32 %v422, %v414
    %v424 = vadd.f32 %v400, %v423
    %v426 = vunpack.c.l.s4 1966171168
    %v427 = vunpack.c.0.s8 %v426
    %v428 = vlaneseq
    %v429 = vshrl.u32 %v428, 7
    %v430 = vsub.s32 %v427, %v429
    %v431 = vrot.slane %v39, %v430
    %v432 = vcombine.high %v431, %v431
    %v434 = vunpack.c.l.s4 1966171168
    %v435 = vunpack.c.0.s8 %v434
    %v436 = vlaneseq
    %v437 = vshrl.u32 %v436, 7
    %v438 = vsub.s32 %v435, %v437
    %v439 = vrot.slane %v431, %v438
    %v441 = vunpack.c.l.s4 1966171168
    %v442 = vunpack.c.0.s8 %v441
    %v443 = vlaneseq
    %v444 = vshrl.u32 %v443, 7
    %v445 = vsub.s32 %v442, %v444
    %v446 = vrot.slane %v432, %v445
    %v448 = vmul.f32 %v40, %v446
    %v449 = vsel %vm47, %v75, 0.0
    %450 = vadd.xlane.f32.xlu0 %v449
    %v451 = vpop.xlane.xlu0 %450
    %v452 = vsel %vm47, %v83, 0.0
    %453 = vadd.xlane.f32.xlu0 %v452
    %v454 = vpop.xlane.xlu0 %453
    %v456 = vlaneseq
    %v457 = vshrl.u32 %v456, 7
    %v458 = vsub.s32 0, %v457
    %v459 = vrot.slane %v448, %v458
    %v461 = vmul.f32 %v451, %v459
    %v462 = vmul.f32 %v461, 2.0
    %v463 = vadd.f32 %v418, %v462
    %v464 = vmul.f32 %v454, %v459
    %v465 = vmul.f32 %v464, 2.0
    %v466 = vadd.f32 %v421, %v465
    %v467 = vadd.f32 %v451, %v454
    %v468 = vmul.f32 %v467, %v459
    %v469 = vadd.f32 %v424, %v468
    %v470 = vcombine.high %v439, %v439
    %v472 = vmul.f32 %v40, %v470
    %v473 = vsel %vm47, %v107, 0.0
    %474 = vadd.xlane.f32.xlu0 %v473
    %v475 = vpop.xlane.xlu0 %474
    %v476 = vsel %vm47, %v114, 0.0
    %477 = vadd.xlane.f32.xlu0 %v476
    %v478 = vpop.xlane.xlu0 %477
    %v480 = vlaneseq
    %v481 = vshrl.u32 %v480, 7
    %v482 = vsub.s32 0, %v481
    %v483 = vrot.slane %v472, %v482
    %v485 = vmul.f32 %v475, %v483
    %v486 = vmul.f32 %v485, 2.0
    %v487 = vadd.f32 %v463, %v486
    %v488 = vmul.f32 %v478, %v483
    %v489 = vmul.f32 %v488, 2.0
    %v490 = vadd.f32 %v466, %v489
    %v491 = vadd.f32 %v475, %v478
    %v492 = vmul.f32 %v491, %v483
    %v493 = vadd.f32 %v469, %v492
    %v494 = vcombine.high %v446, %v446
    %v496 = vmul.f32 %v40, %v494
    %v497 = vsel %vm47, %v138, 0.0
    %498 = vadd.xlane.f32.xlu0 %v497
    %v499 = vpop.xlane.xlu0 %498
    %v500 = vsel %vm47, %v145, 0.0
    %501 = vadd.xlane.f32.xlu0 %v500
    %v502 = vpop.xlane.xlu0 %501
    %v504 = vlaneseq
    %v505 = vshrl.u32 %v504, 7
    %v506 = vsub.s32 0, %v505
    %v507 = vrot.slane %v496, %v506
    %v509 = vmul.f32 %v499, %v507
    %v510 = vmul.f32 %v509, 2.0
    %v511 = vadd.f32 %v487, %v510
    %v512 = vmul.f32 %v502, %v507
    %v513 = vmul.f32 %v512, 2.0
    %v514 = vadd.f32 %v490, %v513
    %v515 = vadd.f32 %v499, %v502
    %v516 = vmul.f32 %v515, %v507
    %v517 = vadd.f32 %v493, %v516
    %v519 = vlaneseq
    %v520 = vshrl.u32 %v519, 7
    %v521 = vsub.s32 0, %v520
    %v522 = vrot.slane %v42, %v521
    %v524 = vadd.f32 %v517, %v522
    %v525 = vadd.f32 %v511, %v522
    %v526 = vadd.f32 %v514, %v522
    %v527 = vmax.f32 %v525, 1e-16
    %v528 = vrsqrt.pop %v527
    %v529 = vmax.f32 %v526, 1e-16
    %v530 = vrsqrt.pop %v529
    %v531 = vmul.f32 %v524, %v528
    %v532 = vmul.f32 %v531, %v530
    %533 = vst [vmem:[#allocation7] sm:$0xff] %v532
    // Predicated region
    $region22: #{tpu_custom_call.1} parent=1 // pred_check
      _
    $region23: #{tpu_custom_call.1} parent=1 // pred_check_branch
      %535 = sbr.rel (0) target = $region25
    $region24: #{tpu_custom_call.1} parent=1 // pred_region
      %s537 = ssub.s32 128, 128
      %538 = vsyncadd [#allocation4], %s537
      %s540 = sshll.u32 [#allocation7], 4
      %s541 = int_to_ptr.vmem [resolvable:$true] %s540
      %543 = dma.vmem_to_hbm [thread:$0]  %s541, 128, %s3, [#allocation4]
    $region25: #{tpu_custom_call.1} parent=1 // pred_fallthru
      _
    // Predicated region
    $region26: #{tpu_custom_call.1} parent=1 // pred_check
      _
    $region27: #{tpu_custom_call.1} parent=1 // pred_check_branch
      %545 = sbr.rel (0) target = $region29
    $region28: #{tpu_custom_call.1} parent=1 // pred_region
      %546 = dma.done [#allocation4], 128
    $region29: #{tpu_custom_call.1} parent=1 // pred_fallthru
      _
    %547 = vsyncpa [#allocation3], 1
    %548 = vsyncpa [#allocation6], 1
    %549 = vsyncpa [#allocation4], 1

</llo_original>
